<compile_context>
chip_gen: v5e
topology: v5e:2x2
jax: 0.10.0
libtpu: 0.0.40
codegen_flags: <defaults>
</compile_context>

<pallas_src>
import jax
import jax.numpy as jnp
from jax.experimental import pallas as pl
from jax.experimental.pallas import tpu as pltpu

# Static output-joint -> input-part mapping from the PyTorch module.
_JOINT_SRC = (
    0, 0, 0, 0,            # left_leg  = [0, 1, 2, 3]         <- body part 0
    1, 1, 1,               # right_leg[0:3] = [4, 5, 6]       <- body part 1
    2,                     # right_leg[3]   = [7]             <- body part 2
    2, 2, 2, 2, 2, 2,      # torso     = [8..13]              <- body part 2
    3, 3, 3, 3, 3, 3,      # left_arm  = [14..19]             <- body part 3
    4, 4, 4, 4, 4, 4,      # right_arm = [20..25]             <- body part 4
)
NUM_JOINTS = len(_JOINT_SRC)  # 26


def _expand_kernel(x_ref, sel_ref, o_ref):
    # x_ref:   (TR, w)        flattened (N*d*T, w) row tile
    # sel_ref: (w, 26)        one-hot select matrix, sel[p, j] = 1 iff src[j] == p
    # o_ref:   (TR, 26)
    # out[:, j] = x[:, src[j]] exactly (one-hot matmul: x*1.0 + 0.0 terms, f32-exact).
    y = jnp.dot(
        x_ref[...].astype(jnp.float32),
        sel_ref[...],
        preferred_element_type=jnp.float32,
    )
    o_ref[...] = y.astype(o_ref.dtype)


def body_local_inform(body, *, row_tile=1024):
    """JAX/Pallas equivalent of BodyLocalInform.forward. body: (N, d, T, w), w >= 5."""
    N, d, T, w = body.shape
    assert w >= 5, "BodyLocalInform reads body parts 0..4"
    R = N * d * T

    # Collapsing leading dims is a free (metadata-only) reshape — no HBM traffic.
    x2d = body.reshape(R, w)

    # One-hot scatter/select matrix (w, 26); rows >= 5 stay zero (extra parts ignored,
    # matching the PyTorch module which only reads columns 0..4).
    sel = jnp.zeros((w, NUM_JOINTS), jnp.float32)
    sel = sel.at[jnp.array(_JOINT_SRC, jnp.int32), jnp.arange(NUM_JOINTS)].set(1.0)

    # Row tiling: multiple-of-8 sublane tiles when the input is big enough to be
    # worth pipelining / sharding; otherwise a single full block (always legal
    # because the block equals the full array dims).
    if R > row_tile and R % 8 == 0:
        tr = row_tile
    else:
        tr = R
    grid = (pl.cdiv(R, tr),)

    flops = 2 * R * w * NUM_JOINTS
    bytes_accessed = 4 * (R * w + w * NUM_JOINTS + R * NUM_JOINTS)

    out2d = pl.pallas_call(
        _expand_kernel,
        out_shape=jax.ShapeDtypeStruct((R, NUM_JOINTS), body.dtype),
        grid=grid,
        in_specs=[
            pl.BlockSpec((tr, w), lambda i: (i, 0)),
            # Constant index_map -> select matrix stays resident in VMEM across steps.
            pl.BlockSpec((w, NUM_JOINTS), lambda i: (0, 0)),
        ],
        out_specs=pl.BlockSpec((tr, NUM_JOINTS), lambda i: (i, 0)),
        compiler_params=pltpu.CompilerParams(
            dimension_semantics=("parallel",),
        ),
        cost_estimate=pl.CostEstimate(
            flops=flops, transcendentals=0, bytes_accessed=bytes_accessed
        ),
    )(x2d, sel)

    return out2d.reshape(N, d, T, NUM_JOINTS)


if __name__ == "__main__":
    key = jax.random.PRNGKey(0)

    # Small shapes consistent with the module: (N, d, T, w) with w = 5 body parts.
    N, D, T, W = 2, 3, 16, 5
    body = jax.random.normal(key, (N, D, T, W), jnp.float32)

    out = body_local_inform(body)
    out = jax.block_until_ready(out)

    assert out.shape == (N, D, T, NUM_JOINTS), out.shape
    assert jnp.all(jnp.isfinite(out))

    # Pure-JAX reference of the PyTorch forward (static column gather).
    ref = jnp.take(body, jnp.array(_JOINT_SRC, jnp.int32), axis=-1)
    assert jnp.allclose(out, ref), float(jnp.max(jnp.abs(out - ref)))

    print("KERNEL_OK")
</pallas_src>

<mosaic_0001>
module attributes {stable_mosaic.version = 11 : i64} {
  func.func @_expand_kernel(%arg0: i32, %arg1: memref<96x5xf32, #tpu.memory_space<vmem>>, %arg2: memref<5x26xf32, #tpu.memory_space<vmem>>, %arg3: memref<96x26xf32, #tpu.memory_space<vmem>>) attributes {dimension_semantics = [#tpu.dimension_semantics<parallel>], iteration_bounds = array<i64: 1>, scalar_prefetch = 0 : i64, scratch_operands = 0 : i64, tpu.core_type = #tpu.core_type<tc>, window_params = [{transform_indices = @transform_0, window_bounds = array<i64: 96, 5>}, {pipeline_mode = #tpu.pipeline_mode<synchronous>, transform_indices = @transform_1, window_bounds = array<i64: 5, 26>}, {transform_indices = @transform_2, window_bounds = array<i64: 96, 26>}]} {
    %c0 = arith.constant 0 : index
    %c0_0 = arith.constant 0 : index
    %0 = vector.load %arg1[%c0, %c0_0] : memref<96x5xf32, #tpu.memory_space<vmem>>, vector<96x5xf32>
    %c0_1 = arith.constant 0 : index
    %c0_2 = arith.constant 0 : index
    %1 = vector.load %arg2[%c0_1, %c0_2] : memref<5x26xf32, #tpu.memory_space<vmem>>, vector<5x26xf32>
    %cst = arith.constant dense<0.000000e+00> : vector<96x26xf32>
    %2 = tpu.matmul %0, %1, %cst {dimension_numbers = #tpu.dot_dimension_numbers<[1], [0], [0], [1], [0, 0, 1, 1], [], []>} : vector<96x5xf32>, vector<5x26xf32>, vector<96x26xf32> -> vector<96x26xf32>
    %c0_3 = arith.constant 0 : index
    %c0_4 = arith.constant 0 : index
    %3 = vector.load %arg3[%c0_3, %c0_4] : memref<96x26xf32, #tpu.memory_space<vmem>>, vector<96x26xf32>
    tpu.vector_store %arg3[%c0_3, %c0_4], %2 {strides = array<i32>} : memref<96x26xf32, #tpu.memory_space<vmem>>, vector<96x26xf32>,
    return
  }
  func.func @transform_0(%arg0: i32) -> (i32, i32) {
    %c0_i32 = arith.constant 0 : i32
    %c0_i32_0 = arith.constant 0 : i32
    return %arg0, %c0_i32 : i32, i32
  }
  func.func @transform_1(%arg0: i32) -> (i32, i32) {
    %c0_i32 = arith.constant 0 : i32
    %c0_i32_0 = arith.constant 0 : i32
    %c0_i32_1 = arith.constant 0 : i32
    return %c0_i32, %c0_i32_0 : i32, i32
  }
  func.func @transform_2(%arg0: i32) -> (i32, i32) {
    %c0_i32 = arith.constant 0 : i32
    %c0_i32_0 = arith.constant 0 : i32
    return %arg0, %c0_i32 : i32, i32
  }
}

</mosaic_0001>

<llo_original>
// kernel: tpu_custom_call.1
$region0: #{tpu_custom_call.1}
  #allocation0 [shape = 'u32[]', space=smem, size = 0x4, offset = 0x4, fixed_abs, tag = 'smem constant byte address 0x4 - core index']
  #allocation1 [shape = 'u32[72,128]{1,0:T(1,128)}', space=vmem, size = 0x9000, scoped, tag = 'internal scratch']
  %s0 = inlined_call_operand.vmem [shape: f32[96,5], index: 0, kind: input, shape index: {}]
  %s1 = inlined_call_operand.vmem [shape: f32[5,26], index: 1, kind: input, shape index: {}]
  %s2 = inlined_call_operand.vmem [shape: f32[96,26], index: 2, kind: output, shape index: {}]
  %s3 = sld [smem:[#allocation0]]
  $region18: #{tpu_custom_call.1} parent=0
    _
  %s5 = ssub.s32 1, %s3
  %s6 = scalar_select 0, %s5, %s3
  // Predicated region
  $region2: #{tpu_custom_call.1} parent=0 // pred_check
    _
  $region3: #{tpu_custom_call.1} parent=0 // pred_check_branch
    %8 = sbr.rel (0) target = $region5
  $region4: #{tpu_custom_call.1} parent=0 // pred_region
    _
  $region5: #{tpu_custom_call.1} parent=0 // pred_fallthru
    _
  // Predicated region
  $region6: #{tpu_custom_call.1} parent=0 // pred_check
    _
  $region7: #{tpu_custom_call.1} parent=0 // pred_check_branch
    %10 = sbr.rel (0) target = $region9
  $region8: #{tpu_custom_call.1} parent=0 // pred_region
    _
  $region9: #{tpu_custom_call.1} parent=0 // pred_fallthru
    _
  %v11 = vld [vmem:[%s0] sm:$0xff]
  %v12 = vld [vmem:[%s0 + $0x8] sm:$0xff]
  %v13 = vld [vmem:[%s0 + $0x10] sm:$0xff]
  %v14 = vld [vmem:[%s0 + $0x18] sm:$0xff]
  %v15 = vld [vmem:[%s0 + $0x20] sm:$0xff]
  %v16 = vld [vmem:[%s0 + $0x28] sm:$0xff]
  %v17 = vld [vmem:[%s0 + $0x30] sm:$0xff]
  %v18 = vld [vmem:[%s0 + $0x38] sm:$0xff]
  %v19 = vld [vmem:[%s0 + $0x40] sm:$0xff]
  %v20 = vld [vmem:[%s0 + $0x48] sm:$0xff]
  %v21 = vld [vmem:[%s0 + $0x50] sm:$0xff]
  %v22 = vld [vmem:[%s0 + $0x58] sm:$0xff]
  %v23 = vld [vmem:[%s1] sm:$0x1f]
  %vm24 = vcmask 39936
  %v26 = vsel %vm24, %v11, 0
  %v29 = vsel %vm24, %v12, 0
  %v32 = vsel %vm24, %v13, 0
  %v35 = vsel %vm24, %v14, 0
  %v38 = vsel %vm24, %v15, 0
  %v41 = vsel %vm24, %v16, 0
  %v44 = vsel %vm24, %v17, 0
  %v47 = vsel %vm24, %v18, 0
  %v50 = vsel %vm24, %v19, 0
  %v53 = vsel %vm24, %v20, 0
  %v56 = vsel %vm24, %v21, 0
  %v59 = vsel %vm24, %v22, 0
  %vm61 = vcmask 1044480
  %v63 = vsel %vm61, %v23, 0
  %65 = vmatpush.msra.mxu0 0.0
  %66 = vmatpush.msra.mxu0 0.0
  %67 = vmatpush.msra.mxu0 0.0
  %68 = vmatpush.msra.mxu0 0.0
  %69 = vmatpush.msra.mxu0 0.0
  %70 = vmatpush.msra.mxu0 0.0
  %71 = vmatpush.msra.mxu0 0.0
  %72 = vmatpush.msra.mxu0 0.0
  %73 = vmatpush.msra.mxu0 0.0
  %74 = vmatpush.msra.mxu0 0.0
  %75 = vmatpush.msra.mxu0 0.0
  %76 = vmatpush.msra.mxu0 0.0
  %77 = vmatpush.msra.mxu0 0.0
  %78 = vmatpush.msra.mxu0 0.0
  %79 = vmatpush.msra.mxu0 0.0
  %80 = vmatpush.msra.mxu0 %v63
  %81 = vmatmul.f32.gmra.mxu0 %v26
  %v82 = vpop.f32.mrf.mxu0
  %v83 = vadd.f32 0.0, %v82
  %84 = vmatmul.f32.gmra.mxu0 %v29
  %v85 = vpop.f32.mrf.mxu0
  %v86 = vadd.f32 0.0, %v85
  %87 = vmatmul.f32.gmra.mxu0 %v32
  %v88 = vpop.f32.mrf.mxu0
  %v89 = vadd.f32 0.0, %v88
  %90 = vmatmul.f32.gmra.mxu0 %v35
  %v91 = vpop.f32.mrf.mxu0
  %v92 = vadd.f32 0.0, %v91
  %93 = vmatmul.f32.gmra.mxu0 %v38
  %v94 = vpop.f32.mrf.mxu0
  %v95 = vadd.f32 0.0, %v94
  %96 = vmatmul.f32.gmra.mxu0 %v41
  %v97 = vpop.f32.mrf.mxu0
  %v98 = vadd.f32 0.0, %v97
  %99 = vmatmul.f32.gmra.mxu0 %v44
  %v100 = vpop.f32.mrf.mxu0
  %v101 = vadd.f32 0.0, %v100
  %102 = vmatmul.f32.gmra.mxu0 %v47
  %v103 = vpop.f32.mrf.mxu0
  %v104 = vadd.f32 0.0, %v103
  %105 = vmatmul.f32.gmra.mxu0 %v50
  %v106 = vpop.f32.mrf.mxu0
  %v107 = vadd.f32 0.0, %v106
  %108 = vmatmul.f32.gmra.mxu0 %v53
  %v109 = vpop.f32.mrf.mxu0
  %v110 = vadd.f32 0.0, %v109
  %111 = vmatmul.f32.gmra.mxu0 %v56
  %v112 = vpop.f32.mrf.mxu0
  %v113 = vadd.f32 0.0, %v112
  %114 = vmatmul.f32.gmra.mxu0 %v59
  %v115 = vpop.f32.mrf.mxu0
  %v116 = vadd.f32 0.0, %v115
  %117 = vdwg.mxu0
  %vm118 = vcmask 211968
  %119 = vst.msk [vmem:[%s2] sm:$0xff] %vm118, %v83
  %120 = vst.msk [vmem:[%s2 + $0x8] sm:$0xff] %vm118, %v86
  %121 = vst.msk [vmem:[%s2 + $0x10] sm:$0xff] %vm118, %v89
  %122 = vst.msk [vmem:[%s2 + $0x18] sm:$0xff] %vm118, %v92
  %123 = vst.msk [vmem:[%s2 + $0x20] sm:$0xff] %vm118, %v95
  %124 = vst.msk [vmem:[%s2 + $0x28] sm:$0xff] %vm118, %v98
  %125 = vst.msk [vmem:[%s2 + $0x30] sm:$0xff] %vm118, %v101
  %126 = vst.msk [vmem:[%s2 + $0x38] sm:$0xff] %vm118, %v104
  %127 = vst.msk [vmem:[%s2 + $0x40] sm:$0xff] %vm118, %v107
  %128 = vst.msk [vmem:[%s2 + $0x48] sm:$0xff] %vm118, %v110
  %129 = vst.msk [vmem:[%s2 + $0x50] sm:$0xff] %vm118, %v113
  %130 = vst.msk [vmem:[%s2 + $0x58] sm:$0xff] %vm118, %v116
  // Predicated region
  $region10: #{tpu_custom_call.1} parent=0 // pred_check
    _
  $region11: #{tpu_custom_call.1} parent=0 // pred_check_branch
    %132 = sbr.rel (0) target = $region13
  $region12: #{tpu_custom_call.1} parent=0 // pred_region
    _
  $region13: #{tpu_custom_call.1} parent=0 // pred_fallthru
    _
  // Predicated region
  $region14: #{tpu_custom_call.1} parent=0 // pred_check
    _
  $region15: #{tpu_custom_call.1} parent=0 // pred_check_branch
    %134 = sbr.rel (0) target = $region17
  $region16: #{tpu_custom_call.1} parent=0 // pred_region
    _
  $region17: #{tpu_custom_call.1} parent=0 // pred_fallthru
    _

</llo_original>
